<compile_context>
chip_gen: v7x
topology: tpu7x:2x2x1
jax: 0.10.0
libtpu: 0.0.40
codegen_flags: <defaults>
</compile_context>

<pallas_src>
import jax
import jax.numpy as jnp
from jax.experimental import pallas as pl
from jax.experimental.pallas import tpu as pltpu

# nn.Module defaults (the module's only "parameters").
SPA_WEIGHT = 1.0
EXP_WEIGHT = 10.0
COL_WEIGHT = 5.0
TVS_WEIGHT = 1600.0
TARGET_EXPOSURE = 0.6


def _build_kernel(B, C, H, W, Cc, Hc, Wc, Bt,
                  spa_w, exp_w, col_w, tvs_w, target_exposure):
    # Final-mean denominators, folded into the per-step partial sums so the
    # finalisation is just a weighted add of four scalars.
    inv_cnt_x = 1.0 / float(B * H * (W - 1))
    inv_cnt_y = 1.0 / float(B * (H - 1) * W)
    inv_cnt_exp = 1.0 / float(B * C)
    inv_cnt_col = 1.0 / float(B)
    inv_cnt_tvi = 1.0 / float(B * Cc * (Hc - 1) * Wc)
    inv_cnt_tvj = 1.0 / float(B * Cc * Hc * (Wc - 1))
    inv_n = 1.0 / float(H * W)

    def kernel(enh_ref, org_ref, cur_ref, out_ref, acc_ref):
        step = pl.program_id(0)

        @pl.when(step == 0)
        def _init():
            for i in range(8):
                acc_ref[i] = 0.0

        # --- load current image block, upcast to f32 for accumulation -----
        e = enh_ref[...].astype(jnp.float32)       # (Bt, C, H, W)
        o = org_ref[...].astype(jnp.float32)       # (Bt, C, H, W)
        cur = cur_ref[...].astype(jnp.float32)     # (Bt, Cc, Hc, Wc)

        er, eg, eb = e[:, 0], e[:, 1], e[:, 2]     # (Bt, H, W) slabs
        xr, xg, xb = o[:, 0], o[:, 1], o[:, 2]

        # --- spatial consistency: gradients of gray(enh) - gray(org) ------
        # grad(gray_e) - grad(gray_o) == grad(gray_e - gray_o), so one (Bt,H,W)
        # tensor carries the whole term; full sublane (H) / lane (W) usage.
        d = (0.299 * (er - xr) + 0.587 * (eg - xg) + 0.114 * (eb - xb))
        spa_part = (
            inv_cnt_x * jnp.sum(jnp.abs(d[:, :, 1:] - d[:, :, :-1]))
            + inv_cnt_y * jnp.sum(jnp.abs(d[:, 1:, :] - d[:, :-1, :])))

        # --- exposure / colour constancy from per-image channel means -----
        def ch_mean(x):                            # (Bt, H, W) -> (Bt, 1)
            return jnp.sum(jnp.sum(x, axis=2), axis=1, keepdims=True) * inv_n

        m_r, m_g, m_b = ch_mean(er), ch_mean(eg), ch_mean(eb)
        exp_part = inv_cnt_exp * jnp.sum(
            jnp.abs(m_r - target_exposure)
            + jnp.abs(m_g - target_exposure)
            + jnp.abs(m_b - target_exposure))
        col_part = inv_cnt_col * jnp.sum(
            jnp.abs(m_r - m_g) + jnp.abs(m_r - m_b) + jnp.abs(m_g - m_b))

        # --- total variation of the curve maps -----------------------------
        c = cur.reshape(Bt * Cc, Hc, Wc)           # merge major dims (free-ish)
        tvs_part = (
            inv_cnt_tvi * jnp.sum(jnp.abs(c[:, 1:, :] - c[:, :-1, :]))
            + inv_cnt_tvj * jnp.sum(jnp.abs(c[:, :, 1:] - c[:, :, :-1])))

        # --- accumulate (already normalised) partial sums ------------------
        acc_ref[0] += spa_part
        acc_ref[1] += exp_part
        acc_ref[2] += col_part
        acc_ref[3] += tvs_part

        # Write the outputs every step (a handful of scalar ops); the final
        # grid step leaves the correct values in the SMEM output block.
        spa = acc_ref[0]
        exp_l = acc_ref[1]
        col_l = acc_ref[2]
        tvs = acc_ref[3]
        out_ref[0] = spa_w * spa + exp_w * exp_l + col_w * col_l + tvs_w * tvs
        out_ref[1] = spa
        out_ref[2] = exp_l
        out_ref[3] = col_l
        out_ref[4] = tvs
        out_ref[5] = 0.0
        out_ref[6] = 0.0
        out_ref[7] = 0.0

    return kernel


def zero_dce_loss(enhanced, original, curves,
                  spa_weight=SPA_WEIGHT, exp_weight=EXP_WEIGHT,
                  col_weight=COL_WEIGHT, tvs_weight=TVS_WEIGHT,
                  target_exposure=TARGET_EXPOSURE):
    """Returns (total_loss, loss_dict) like ZeroDCELoss.forward."""
    B, C, H, W = enhanced.shape
    Bc, Cc, Hc, Wc = curves.shape
    assert original.shape == enhanced.shape
    assert C == 3, "spatial / colour terms assume RGB input"
    assert Bc == B, "curves must share the batch dimension"
    assert H >= 2 and W >= 2 and Hc >= 2 and Wc >= 2

    img_item = jnp.dtype(enhanced.dtype).itemsize
    cur_item = jnp.dtype(curves.dtype).itemsize
    per_img_bytes = 2 * C * H * W * img_item + Cc * Hc * Wc * cur_item

    # Batch several images per grid step to amortise per-step pipeline
    # overhead while keeping the double-buffered working set a few MiB.
    target_block_bytes = 4 << 20
    Bt = 1
    for cand in range(min(B, 8), 0, -1):
        if B % cand == 0 and cand * per_img_bytes <= target_block_bytes:
            Bt = cand
            break
    grid = (B // Bt,)
    block_bytes = Bt * per_img_bytes

    # VMEM budget: double-buffered input blocks + f32 temporaries + headroom,
    # floored at 16 MiB and capped at 48 MiB (safe on v7x's 64 MiB physical).
    vmem_limit = int(min(max(8 * block_bytes + (4 << 20), 16 << 20), 48 << 20))

    kernel = _build_kernel(B, C, H, W, Cc, Hc, Wc, Bt,
                           float(spa_weight), float(exp_weight),
                           float(col_weight), float(tvs_weight),
                           float(target_exposure))

    cost = pl.CostEstimate(
        flops=int(40 * B * C * H * W + 8 * B * Cc * Hc * Wc),
        transcendentals=0,
        bytes_accessed=int(2 * B * C * H * W * img_item
                           + B * Cc * Hc * Wc * cur_item + 32),
    )

    out = pl.pallas_call(
        kernel,
        grid=grid,
        in_specs=[
            pl.BlockSpec((Bt, C, H, W), lambda b: (b, 0, 0, 0)),
            pl.BlockSpec((Bt, C, H, W), lambda b: (b, 0, 0, 0)),
            pl.BlockSpec((Bt, Cc, Hc, Wc), lambda b: (b, 0, 0, 0)),
        ],
        out_specs=pl.BlockSpec((8,), lambda b: (0,),
                               memory_space=pltpu.MemorySpace.SMEM),
        out_shape=jax.ShapeDtypeStruct((8,), jnp.float32),
        scratch_shapes=[pltpu.SMEM((8,), jnp.float32)],
        compiler_params=pltpu.CompilerParams(
            dimension_semantics=("arbitrary",),   # grid axis carries the accumulator
            vmem_limit_bytes=vmem_limit),
        cost_estimate=cost,
    )(enhanced, original, curves)

    total = out[0]
    loss_dict = {
        "total": out[0],
        "spatial": out[1],
        "exposure": out[2],
        "color": out[3],
        "smoothness": out[4],
    }
    return total, loss_dict


def _reference_loss(enhanced, original, curves):
    """Pure-JAX reference mirroring the PyTorch module, for validation."""
    def rgb_to_gray(img):
        return 0.299 * img[:, 0] + 0.587 * img[:, 1] + 0.114 * img[:, 2]

    ge, go = rgb_to_gray(enhanced), rgb_to_gray(original)
    spa = (jnp.mean(jnp.abs((ge[:, :, 1:] - ge[:, :, :-1])
                            - (go[:, :, 1:] - go[:, :, :-1])))
           + jnp.mean(jnp.abs((ge[:, 1:, :] - ge[:, :-1, :])
                              - (go[:, 1:, :] - go[:, :-1, :]))))

    mean_int = jnp.mean(enhanced, axis=(2, 3))
    exp_l = jnp.mean(jnp.abs(mean_int - TARGET_EXPOSURE))

    m = mean_int
    col = (jnp.mean(jnp.abs(m[:, 0] - m[:, 1]))
           + jnp.mean(jnp.abs(m[:, 0] - m[:, 2]))
           + jnp.mean(jnp.abs(m[:, 1] - m[:, 2])))

    tvs = (jnp.mean(jnp.abs(curves[:, :, 1:, :] - curves[:, :, :-1, :]))
           + jnp.mean(jnp.abs(curves[:, :, :, 1:] - curves[:, :, :, :-1])))

    total = (SPA_WEIGHT * spa + EXP_WEIGHT * exp_l
             + COL_WEIGHT * col + TVS_WEIGHT * tvs)
    return total, {"total": total, "spatial": spa, "exposure": exp_l,
                   "color": col, "smoothness": tvs}


if __name__ == "__main__":
    key = jax.random.PRNGKey(0)
    k1, k2, k3 = jax.random.split(key, 3)

    B, C, H, W = 2, 3, 16, 16
    enhanced = jax.random.uniform(k1, (B, C, H, W), dtype=jnp.float32)
    original = jax.random.uniform(k2, (B, C, H, W), dtype=jnp.float32) * 0.3
    curves = jax.random.uniform(k3, (B, C, H, W), dtype=jnp.float32,
                                minval=-1.0, maxval=1.0)

    total, loss_dict = zero_dce_loss(enhanced, original, curves)
    total = jax.block_until_ready(total)

    ref_total, ref_dict = _reference_loss(enhanced, original, curves)
    assert jnp.allclose(total, ref_total, rtol=1e-4, atol=1e-5), (total, ref_total)
    for k in ("spatial", "exposure", "color", "smoothness"):
        assert jnp.allclose(loss_dict[k], ref_dict[k], rtol=1e-4, atol=1e-5), (
            k, loss_dict[k], ref_dict[k])

    print("KERNEL_OK")
</pallas_src>

<mosaic_0001>
module attributes {stable_mosaic.version = 11 : i64} {
  func.func @kernel(%arg0: i32, %arg1: memref<2x3x16x16xf32, #tpu.memory_space<vmem>>, %arg2: memref<2x3x16x16xf32, #tpu.memory_space<vmem>>, %arg3: memref<2x3x16x16xf32, #tpu.memory_space<vmem>>, %arg4: memref<8xf32, #tpu.memory_space<smem>>, %arg5: memref<8xf32, #tpu.memory_space<smem>>) attributes {dimension_semantics = [#tpu.dimension_semantics<arbitrary>], iteration_bounds = array<i64: 1>, scalar_prefetch = 0 : i64, scratch_operands = 1 : i64, tpu.core_type = #tpu.core_type<tc>, window_params = [{transform_indices = @transform_0, window_bounds = array<i64: 2, 3, 16, 16>}, {transform_indices = @transform_1, window_bounds = array<i64: 2, 3, 16, 16>}, {transform_indices = @transform_2, window_bounds = array<i64: 2, 3, 16, 16>}, {transform_indices = @transform_3, window_bounds = array<i64: 8>}]} {
    %c0_i32 = arith.constant 0 : i32
    %0 = arith.cmpi eq, %arg0, %c0_i32 : i32
    %1 = arith.extui %0 : i1 to i32
    %c0_i32_0 = arith.constant 0 : i32
    %2 = arith.cmpi ne, %1, %c0_i32_0 : i32
    scf.if %2 {
      %cst_58 = arith.constant 0.000000e+00 : f32
      %c0_59 = arith.constant 0 : index
      %143 = memref.load %arg5[%c0_59] : memref<8xf32, #tpu.memory_space<smem>>
      memref.store %cst_58, %arg5[%c0_59] : memref<8xf32, #tpu.memory_space<smem>>
      %cst_60 = arith.constant 0.000000e+00 : f32
      %c1_61 = arith.constant 1 : index
      %144 = memref.load %arg5[%c1_61] : memref<8xf32, #tpu.memory_space<smem>>
      memref.store %cst_60, %arg5[%c1_61] : memref<8xf32, #tpu.memory_space<smem>>
      %cst_62 = arith.constant 0.000000e+00 : f32
      %c2_63 = arith.constant 2 : index
      %145 = memref.load %arg5[%c2_63] : memref<8xf32, #tpu.memory_space<smem>>
      memref.store %cst_62, %arg5[%c2_63] : memref<8xf32, #tpu.memory_space<smem>>
      %cst_64 = arith.constant 0.000000e+00 : f32
      %c3_65 = arith.constant 3 : index
      %146 = memref.load %arg5[%c3_65] : memref<8xf32, #tpu.memory_space<smem>>
      memref.store %cst_64, %arg5[%c3_65] : memref<8xf32, #tpu.memory_space<smem>>
      %cst_66 = arith.constant 0.000000e+00 : f32
      %c4_67 = arith.constant 4 : index
      %147 = memref.load %arg5[%c4_67] : memref<8xf32, #tpu.memory_space<smem>>
      memref.store %cst_66, %arg5[%c4_67] : memref<8xf32, #tpu.memory_space<smem>>
      %cst_68 = arith.constant 0.000000e+00 : f32
      %c5_69 = arith.constant 5 : index
      %148 = memref.load %arg5[%c5_69] : memref<8xf32, #tpu.memory_space<smem>>
      memref.store %cst_68, %arg5[%c5_69] : memref<8xf32, #tpu.memory_space<smem>>
      %cst_70 = arith.constant 0.000000e+00 : f32
      %c6_71 = arith.constant 6 : index
      %149 = memref.load %arg5[%c6_71] : memref<8xf32, #tpu.memory_space<smem>>
      memref.store %cst_70, %arg5[%c6_71] : memref<8xf32, #tpu.memory_space<smem>>
      %cst_72 = arith.constant 0.000000e+00 : f32
      %c7_73 = arith.constant 7 : index
      %150 = memref.load %arg5[%c7_73] : memref<8xf32, #tpu.memory_space<smem>>
      memref.store %cst_72, %arg5[%c7_73] : memref<8xf32, #tpu.memory_space<smem>>
    } else {
    }
    %c0 = arith.constant 0 : index
    %c0_1 = arith.constant 0 : index
    %c0_2 = arith.constant 0 : index
    %c0_3 = arith.constant 0 : index
    %3 = vector.load %arg1[%c0, %c0_1, %c0_2, %c0_3] : memref<2x3x16x16xf32, #tpu.memory_space<vmem>>, vector<2x3x16x16xf32>
    %c0_4 = arith.constant 0 : index
    %c0_5 = arith.constant 0 : index
    %c0_6 = arith.constant 0 : index
    %c0_7 = arith.constant 0 : index
    %4 = vector.load %arg2[%c0_4, %c0_5, %c0_6, %c0_7] : memref<2x3x16x16xf32, #tpu.memory_space<vmem>>, vector<2x3x16x16xf32>
    %c0_8 = arith.constant 0 : index
    %c0_9 = arith.constant 0 : index
    %c0_10 = arith.constant 0 : index
    %c0_11 = arith.constant 0 : index
    %5 = vector.load %arg3[%c0_8, %c0_9, %c0_10, %c0_11] : memref<2x3x16x16xf32, #tpu.memory_space<vmem>>, vector<2x3x16x16xf32>
    %6 = vector.extract_strided_slice %3 {offsets = [0, 0, 0, 0], sizes = [2, 1, 16, 16], strides = [1, 1, 1, 1]} : vector<2x3x16x16xf32> to vector<2x1x16x16xf32>
    %7 = vector.shape_cast %6 : vector<2x1x16x16xf32> to vector<2x16x16xf32>
    %8 = vector.extract_strided_slice %3 {offsets = [0, 1, 0, 0], sizes = [2, 1, 16, 16], strides = [1, 1, 1, 1]} : vector<2x3x16x16xf32> to vector<2x1x16x16xf32>
    %9 = vector.shape_cast %8 : vector<2x1x16x16xf32> to vector<2x16x16xf32>
    %10 = vector.extract_strided_slice %3 {offsets = [0, 2, 0, 0], sizes = [2, 1, 16, 16], strides = [1, 1, 1, 1]} : vector<2x3x16x16xf32> to vector<2x1x16x16xf32>
    %11 = vector.shape_cast %10 : vector<2x1x16x16xf32> to vector<2x16x16xf32>
    %12 = vector.extract_strided_slice %4 {offsets = [0, 0, 0, 0], sizes = [2, 1, 16, 16], strides = [1, 1, 1, 1]} : vector<2x3x16x16xf32> to vector<2x1x16x16xf32>
    %13 = vector.shape_cast %12 : vector<2x1x16x16xf32> to vector<2x16x16xf32>
    %14 = vector.extract_strided_slice %4 {offsets = [0, 1, 0, 0], sizes = [2, 1, 16, 16], strides = [1, 1, 1, 1]} : vector<2x3x16x16xf32> to vector<2x1x16x16xf32>
    %15 = vector.shape_cast %14 : vector<2x1x16x16xf32> to vector<2x16x16xf32>
    %16 = vector.extract_strided_slice %4 {offsets = [0, 2, 0, 0], sizes = [2, 1, 16, 16], strides = [1, 1, 1, 1]} : vector<2x3x16x16xf32> to vector<2x1x16x16xf32>
    %17 = vector.shape_cast %16 : vector<2x1x16x16xf32> to vector<2x16x16xf32>
    %18 = arith.subf %7, %13 : vector<2x16x16xf32>
    %cst = arith.constant 2.990000e-01 : f32
    %19 = vector.broadcast %cst : f32 to vector<2x16x16xf32>
    %20 = arith.mulf %19, %18 : vector<2x16x16xf32>
    %21 = arith.subf %9, %15 : vector<2x16x16xf32>
    %cst_12 = arith.constant 5.870000e-01 : f32
    %22 = vector.broadcast %cst_12 : f32 to vector<2x16x16xf32>
    %23 = arith.mulf %22, %21 : vector<2x16x16xf32>
    %24 = arith.addf %20, %23 : vector<2x16x16xf32>
    %25 = arith.subf %11, %17 : vector<2x16x16xf32>
    %cst_13 = arith.constant 1.140000e-01 : f32
    %26 = vector.broadcast %cst_13 : f32 to vector<2x16x16xf32>
    %27 = arith.mulf %26, %25 : vector<2x16x16xf32>
    %28 = arith.addf %24, %27 : vector<2x16x16xf32>
    %29 = vector.extract_strided_slice %28 {offsets = [0, 0, 1], sizes = [2, 16, 15], strides = [1, 1, 1]} : vector<2x16x16xf32> to vector<2x16x15xf32>
    %30 = vector.extract_strided_slice %28 {offsets = [0, 0, 0], sizes = [2, 16, 15], strides = [1, 1, 1]} : vector<2x16x16xf32> to vector<2x16x15xf32>
    %31 = arith.subf %29, %30 : vector<2x16x15xf32>
    %32 = math.absf %31 : vector<2x16x15xf32>
    %33 = vector.shape_cast %32 : vector<2x16x15xf32> to vector<1x2x16x15xf32>
    %cst_14 = arith.constant dense<0.000000e+00> : vector<1xf32>
    %34 = vector.multi_reduction <add>, %33, %cst_14 [1, 2, 3] : vector<1x2x16x15xf32> to vector<1xf32>
    %35 = vector.shape_cast %34 : vector<1xf32> to vector<1x1x1x1xf32>
    %36 = vector.extract %35[0, 0, 0, 0] : f32 from vector<1x1x1x1xf32>
    %cst_15 = arith.constant 0.00208333344 : f32
    %37 = arith.mulf %cst_15, %36 : f32
    %38 = vector.extract_strided_slice %28 {offsets = [0, 1, 0], sizes = [2, 15, 16], strides = [1, 1, 1]} : vector<2x16x16xf32> to vector<2x15x16xf32>
    %39 = vector.extract_strided_slice %28 {offsets = [0, 0, 0], sizes = [2, 15, 16], strides = [1, 1, 1]} : vector<2x16x16xf32> to vector<2x15x16xf32>
    %40 = arith.subf %38, %39 : vector<2x15x16xf32>
    %41 = math.absf %40 : vector<2x15x16xf32>
    %42 = vector.shape_cast %41 : vector<2x15x16xf32> to vector<1x2x15x16xf32>
    %cst_16 = arith.constant dense<0.000000e+00> : vector<1xf32>
    %43 = vector.multi_reduction <add>, %42, %cst_16 [1, 2, 3] : vector<1x2x15x16xf32> to vector<1xf32>
    %44 = vector.shape_cast %43 : vector<1xf32> to vector<1x1x1x1xf32>
    %45 = vector.extract %44[0, 0, 0, 0] : f32 from vector<1x1x1x1xf32>
    %cst_17 = arith.constant 0.00208333344 : f32
    %46 = arith.mulf %cst_17, %45 : f32
    %47 = arith.addf %37, %46 : f32
    %cst_18 = arith.constant dense<0.000000e+00> : vector<2x16xf32>
    %48 = vector.multi_reduction <add>, %7, %cst_18 [2] : vector<2x16x16xf32> to vector<2x16xf32>
    %cst_19 = arith.constant dense<0.000000e+00> : vector<2xf32>
    %49 = vector.multi_reduction <add>, %48, %cst_19 [1] : vector<2x16xf32> to vector<2xf32>
    %50 = vector.shape_cast %49 : vector<2xf32> to vector<2x1xf32>
    %cst_20 = arith.constant 3.906250e-03 : f32
    %51 = vector.broadcast %cst_20 : f32 to vector<2x1xf32>
    %52 = arith.mulf %50, %51 : vector<2x1xf32>
    %cst_21 = arith.constant dense<0.000000e+00> : vector<2x16xf32>
    %53 = vector.multi_reduction <add>, %9, %cst_21 [2] : vector<2x16x16xf32> to vector<2x16xf32>
    %cst_22 = arith.constant dense<0.000000e+00> : vector<2xf32>
    %54 = vector.multi_reduction <add>, %53, %cst_22 [1] : vector<2x16xf32> to vector<2xf32>
    %55 = vector.shape_cast %54 : vector<2xf32> to vector<2x1xf32>
    %cst_23 = arith.constant 3.906250e-03 : f32
    %56 = vector.broadcast %cst_23 : f32 to vector<2x1xf32>
    %57 = arith.mulf %55, %56 : vector<2x1xf32>
    %cst_24 = arith.constant dense<0.000000e+00> : vector<2x16xf32>
    %58 = vector.multi_reduction <add>, %11, %cst_24 [2] : vector<2x16x16xf32> to vector<2x16xf32>
    %cst_25 = arith.constant dense<0.000000e+00> : vector<2xf32>
    %59 = vector.multi_reduction <add>, %58, %cst_25 [1] : vector<2x16xf32> to vector<2xf32>
    %60 = vector.shape_cast %59 : vector<2xf32> to vector<2x1xf32>
    %cst_26 = arith.constant 3.906250e-03 : f32
    %61 = vector.broadcast %cst_26 : f32 to vector<2x1xf32>
    %62 = arith.mulf %60, %61 : vector<2x1xf32>
    %cst_27 = arith.constant 6.000000e-01 : f32
    %63 = vector.broadcast %cst_27 : f32 to vector<2x1xf32>
    %64 = arith.subf %52, %63 : vector<2x1xf32>
    %65 = math.absf %64 : vector<2x1xf32>
    %cst_28 = arith.constant 6.000000e-01 : f32
    %66 = vector.broadcast %cst_28 : f32 to vector<2x1xf32>
    %67 = arith.subf %57, %66 : vector<2x1xf32>
    %68 = math.absf %67 : vector<2x1xf32>
    %69 = arith.addf %65, %68 : vector<2x1xf32>
    %cst_29 = arith.constant 6.000000e-01 : f32
    %70 = vector.broadcast %cst_29 : f32 to vector<2x1xf32>
    %71 = arith.subf %62, %70 : vector<2x1xf32>
    %72 = math.absf %71 : vector<2x1xf32>
    %73 = arith.addf %69, %72 : vector<2x1xf32>
    %74 = vector.shape_cast %73 : vector<2x1xf32> to vector<1x2x1xf32>
    %cst_30 = arith.constant dense<0.000000e+00> : vector<1xf32>
    %75 = vector.multi_reduction <add>, %74, %cst_30 [1, 2] : vector<1x2x1xf32> to vector<1xf32>
    %76 = vector.shape_cast %75 : vector<1xf32> to vector<1x1x1xf32>
    %77 = vector.extract %76[0, 0, 0] : f32 from vector<1x1x1xf32>
    %cst_31 = arith.constant 0.166666672 : f32
    %78 = arith.mulf %cst_31, %77 : f32
    %79 = arith.subf %52, %57 : vector<2x1xf32>
    %80 = math.absf %79 : vector<2x1xf32>
    %81 = arith.subf %52, %62 : vector<2x1xf32>
    %82 = math.absf %81 : vector<2x1xf32>
    %83 = arith.addf %80, %82 : vector<2x1xf32>
    %84 = arith.subf %57, %62 : vector<2x1xf32>
    %85 = math.absf %84 : vector<2x1xf32>
    %86 = arith.addf %83, %85 : vector<2x1xf32>
    %87 = vector.shape_cast %86 : vector<2x1xf32> to vector<1x2x1xf32>
    %cst_32 = arith.constant dense<0.000000e+00> : vector<1xf32>
    %88 = vector.multi_reduction <add>, %87, %cst_32 [1, 2] : vector<1x2x1xf32> to vector<1xf32>
    %89 = vector.shape_cast %88 : vector<1xf32> to vector<1x1x1xf32>
    %90 = vector.extract %89[0, 0, 0] : f32 from vector<1x1x1xf32>
    %cst_33 = arith.constant 5.000000e-01 : f32
    %91 = arith.mulf %cst_33, %90 : f32
    %92 = vector.shape_cast %5 : vector<2x3x16x16xf32> to vector<6x16x16xf32>
    %93 = vector.extract_strided_slice %92 {offsets = [0, 1, 0], sizes = [6, 15, 16], strides = [1, 1, 1]} : vector<6x16x16xf32> to vector<6x15x16xf32>
    %94 = vector.extract_strided_slice %92 {offsets = [0, 0, 0], sizes = [6, 15, 16], strides = [1, 1, 1]} : vector<6x16x16xf32> to vector<6x15x16xf32>
    %95 = arith.subf %93, %94 : vector<6x15x16xf32>
    %96 = math.absf %95 : vector<6x15x16xf32>
    %97 = vector.shape_cast %96 : vector<6x15x16xf32> to vector<1x6x15x16xf32>
    %cst_34 = arith.constant dense<0.000000e+00> : vector<1xf32>
    %98 = vector.multi_reduction <add>, %97, %cst_34 [1, 2, 3] : vector<1x6x15x16xf32> to vector<1xf32>
    %99 = vector.shape_cast %98 : vector<1xf32> to vector<1x1x1x1xf32>
    %100 = vector.extract %99[0, 0, 0, 0] : f32 from vector<1x1x1x1xf32>
    %cst_35 = arith.constant 6.94444461E-4 : f32
    %101 = arith.mulf %cst_35, %100 : f32
    %102 = vector.extract_strided_slice %92 {offsets = [0, 0, 1], sizes = [6, 16, 15], strides = [1, 1, 1]} : vector<6x16x16xf32> to vector<6x16x15xf32>
    %103 = vector.extract_strided_slice %92 {offsets = [0, 0, 0], sizes = [6, 16, 15], strides = [1, 1, 1]} : vector<6x16x16xf32> to vector<6x16x15xf32>
    %104 = arith.subf %102, %103 : vector<6x16x15xf32>
    %105 = math.absf %104 : vector<6x16x15xf32>
    %106 = vector.shape_cast %105 : vector<6x16x15xf32> to vector<1x6x16x15xf32>
    %cst_36 = arith.constant dense<0.000000e+00> : vector<1xf32>
    %107 = vector.multi_reduction <add>, %106, %cst_36 [1, 2, 3] : vector<1x6x16x15xf32> to vector<1xf32>
    %108 = vector.shape_cast %107 : vector<1xf32> to vector<1x1x1x1xf32>
    %109 = vector.extract %108[0, 0, 0, 0] : f32 from vector<1x1x1x1xf32>
    %cst_37 = arith.constant 6.94444461E-4 : f32
    %110 = arith.mulf %cst_37, %109 : f32
    %111 = arith.addf %101, %110 : f32
    %c0_38 = arith.constant 0 : index
    %112 = memref.load %arg5[%c0_38] : memref<8xf32, #tpu.memory_space<smem>>
    %113 = arith.addf %112, %47 : f32
    %c0_39 = arith.constant 0 : index
    %114 = memref.load %arg5[%c0_39] : memref<8xf32, #tpu.memory_space<smem>>
    memref.store %113, %arg5[%c0_39] : memref<8xf32, #tpu.memory_space<smem>>
    %c1 = arith.constant 1 : index
    %115 = memref.load %arg5[%c1] : memref<8xf32, #tpu.memory_space<smem>>
    %116 = arith.addf %115, %78 : f32
    %c1_40 = arith.constant 1 : index
    %117 = memref.load %arg5[%c1_40] : memref<8xf32, #tpu.memory_space<smem>>
    memref.store %116, %arg5[%c1_40] : memref<8xf32, #tpu.memory_space<smem>>
    %c2 = arith.constant 2 : index
    %118 = memref.load %arg5[%c2] : memref<8xf32, #tpu.memory_space<smem>>
    %119 = arith.addf %118, %91 : f32
    %c2_41 = arith.constant 2 : index
    %120 = memref.load %arg5[%c2_41] : memref<8xf32, #tpu.memory_space<smem>>
    memref.store %119, %arg5[%c2_41] : memref<8xf32, #tpu.memory_space<smem>>
    %c3 = arith.constant 3 : index
    %121 = memref.load %arg5[%c3] : memref<8xf32, #tpu.memory_space<smem>>
    %122 = arith.addf %121, %111 : f32
    %c3_42 = arith.constant 3 : index
    %123 = memref.load %arg5[%c3_42] : memref<8xf32, #tpu.memory_space<smem>>
    memref.store %122, %arg5[%c3_42] : memref<8xf32, #tpu.memory_space<smem>>
    %c0_43 = arith.constant 0 : index
    %124 = memref.load %arg5[%c0_43] : memref<8xf32, #tpu.memory_space<smem>>
    %c1_44 = arith.constant 1 : index
    %125 = memref.load %arg5[%c1_44] : memref<8xf32, #tpu.memory_space<smem>>
    %c2_45 = arith.constant 2 : index
    %126 = memref.load %arg5[%c2_45] : memref<8xf32, #tpu.memory_space<smem>>
    %c3_46 = arith.constant 3 : index
    %127 = memref.load %arg5[%c3_46] : memref<8xf32, #tpu.memory_space<smem>>
    %cst_47 = arith.constant 1.000000e+00 : f32
    %128 = arith.mulf %cst_47, %124 : f32
    %cst_48 = arith.constant 1.000000e+01 : f32
    %129 = arith.mulf %cst_48, %125 : f32
    %130 = arith.addf %128, %129 : f32
    %cst_49 = arith.constant 5.000000e+00 : f32
    %131 = arith.mulf %cst_49, %126 : f32
    %132 = arith.addf %130, %131 : f32
    %cst_50 = arith.constant 1.600000e+03 : f32
    %133 = arith.mulf %cst_50, %127 : f32
    %134 = arith.addf %132, %133 : f32
    %c0_51 = arith.constant 0 : index
    %135 = memref.load %arg4[%c0_51] : memref<8xf32, #tpu.memory_space<smem>>
    memref.store %134, %arg4[%c0_51] : memref<8xf32, #tpu.memory_space<smem>>
    %c1_52 = arith.constant 1 : index
    %136 = memref.load %arg4[%c1_52] : memref<8xf32, #tpu.memory_space<smem>>
    memref.store %124, %arg4[%c1_52] : memref<8xf32, #tpu.memory_space<smem>>
    %c2_53 = arith.constant 2 : index
    %137 = memref.load %arg4[%c2_53] : memref<8xf32, #tpu.memory_space<smem>>
    memref.store %125, %arg4[%c2_53] : memref<8xf32, #tpu.memory_space<smem>>
    %c3_54 = arith.constant 3 : index
    %138 = memref.load %arg4[%c3_54] : memref<8xf32, #tpu.memory_space<smem>>
    memref.store %126, %arg4[%c3_54] : memref<8xf32, #tpu.memory_space<smem>>
    %c4 = arith.constant 4 : index
    %139 = memref.load %arg4[%c4] : memref<8xf32, #tpu.memory_space<smem>>
    memref.store %127, %arg4[%c4] : memref<8xf32, #tpu.memory_space<smem>>
    %cst_55 = arith.constant 0.000000e+00 : f32
    %c5 = arith.constant 5 : index
    %140 = memref.load %arg4[%c5] : memref<8xf32, #tpu.memory_space<smem>>
    memref.store %cst_55, %arg4[%c5] : memref<8xf32, #tpu.memory_space<smem>>
    %cst_56 = arith.constant 0.000000e+00 : f32
    %c6 = arith.constant 6 : index
    %141 = memref.load %arg4[%c6] : memref<8xf32, #tpu.memory_space<smem>>
    memref.store %cst_56, %arg4[%c6] : memref<8xf32, #tpu.memory_space<smem>>
    %cst_57 = arith.constant 0.000000e+00 : f32
    %c7 = arith.constant 7 : index
    %142 = memref.load %arg4[%c7] : memref<8xf32, #tpu.memory_space<smem>>
    memref.store %cst_57, %arg4[%c7] : memref<8xf32, #tpu.memory_space<smem>>
    return
  }
  func.func @transform_0(%arg0: i32) -> (i32, i32, i32, i32) {
    %c0_i32 = arith.constant 0 : i32
    %c0_i32_0 = arith.constant 0 : i32
    %c0_i32_1 = arith.constant 0 : i32
    %c0_i32_2 = arith.constant 0 : i32
    return %arg0, %c0_i32, %c0_i32_0, %c0_i32_1 : i32, i32, i32, i32
  }
  func.func @transform_1(%arg0: i32) -> (i32, i32, i32, i32) {
    %c0_i32 = arith.constant 0 : i32
    %c0_i32_0 = arith.constant 0 : i32
    %c0_i32_1 = arith.constant 0 : i32
    %c0_i32_2 = arith.constant 0 : i32
    return %arg0, %c0_i32, %c0_i32_0, %c0_i32_1 : i32, i32, i32, i32
  }
  func.func @transform_2(%arg0: i32) -> (i32, i32, i32, i32) {
    %c0_i32 = arith.constant 0 : i32
    %c0_i32_0 = arith.constant 0 : i32
    %c0_i32_1 = arith.constant 0 : i32
    %c0_i32_2 = arith.constant 0 : i32
    return %arg0, %c0_i32, %c0_i32_0, %c0_i32_1 : i32, i32, i32, i32
  }
  func.func @transform_3(%arg0: i32) -> i32 {
    %c0_i32 = arith.constant 0 : i32
    %c0_i32_0 = arith.constant 0 : i32
    return %c0_i32 : i32
  }
}

</mosaic_0001>

<llo_original>
// kernel: tpu_custom_call.1
$region0: #{tpu_custom_call.1}
  #allocation0 [shape = 'u32[]', space=smem, size = 0x4, offset = 0x4, fixed_abs, tag = 'smem constant byte address 0x4 - core index']
  #allocation1 [shape = 'u32[144,128]{1,0:T(1,128)}', space=vmem, size = 0x12000, scoped, tag = 'internal scratch']
  #allocation2 [shape = 'f32[8]{0:T(128)}', space=smem, size = 0x200, scoped, tag = 'scratch operand']
  %s0 = inlined_call_operand.hbm [shape: f32[2,3,16,16], index: 0, kind: input, shape index: {}]
  %s1 = inlined_call_operand.hbm [shape: f32[2,3,16,16], index: 1, kind: input, shape index: {}]
  %s2 = inlined_call_operand.hbm [shape: f32[2,3,16,16], index: 2, kind: input, shape index: {}]
  %s3 = inlined_call_operand.hbm [shape: f32[8], index: 3, kind: output, shape index: {}]
  %s4 = sld [smem:[#allocation0]]
  $region38: #{tpu_custom_call.1} parent=0
    _
  %s6 = ssub.s32 1, %s4
  %s7 = scalar_select 0, %s6, %s4
  $region1: #{tpu_custom_call.1} parent=0
    #allocation3 [shape = 'u8[49152]{0}', space=vmem, size = 0xc000, scoped, tag = 'input window, operand 0, single buffered']
    #allocation4 [shape = 's32[1]{0}', space=sflag, size = 0x4, scoped, tag = 'scoped memory for tpu_custom_call.1']
    #allocation5 [shape = 's32[1]{0}', space=sflag, size = 0x4, scoped, tag = 'scoped memory for tpu_custom_call.1']
    #allocation6 [shape = 'u8[49152]{0}', space=vmem, size = 0xc000, scoped, tag = 'input window, operand 1, single buffered']
    #allocation7 [shape = 's32[1]{0}', space=sflag, size = 0x4, scoped, tag = 'scoped memory for tpu_custom_call.1']
    #allocation8 [shape = 'u8[49152]{0}', space=vmem, size = 0xc000, scoped, tag = 'input window, operand 2, single buffered']
    #allocation9 [shape = 'u8[512]{0}', space=smem, size = 0x200, scoped, tag = 'output window, operand 0, single buffered']
    %8 = vsyncpa [#allocation4], 0
    %9 = vsyncpa [#allocation7], 0
    %10 = vsyncpa [#allocation5], 0
    // Predicated region
    $region2: #{tpu_custom_call.1} parent=1 // pred_check
      _
    $region3: #{tpu_custom_call.1} parent=1 // pred_check_branch
      %12 = sbr.rel (0) target = $region5
    $region4: #{tpu_custom_call.1} parent=1 // pred_region
      %s14 = ssub.s32 1536, 1536
      %15 = vsyncadd [#allocation4], %s14
      %s16 = sshll.u32 [#allocation3], 4
      %s17 = int_to_ptr.vmem [resolvable:$true] %s16
      %22 = dma.hbm_to_vmem [thread:$0]  %s0, 1536, %s17, [#allocation4], 128, 128, 8
    $region5: #{tpu_custom_call.1} parent=1 // pred_fallthru
      _
    // Predicated region
    $region6: #{tpu_custom_call.1} parent=1 // pred_check
      _
    $region7: #{tpu_custom_call.1} parent=1 // pred_check_branch
      %24 = sbr.rel (0) target = $region9
    $region8: #{tpu_custom_call.1} parent=1 // pred_region
      %s26 = ssub.s32 1536, 1536
      %27 = vsyncadd [#allocation7], %s26
      %s28 = sshll.u32 [#allocation6], 4
      %s29 = int_to_ptr.vmem [resolvable:$true] %s28
      %34 = dma.hbm_to_vmem [thread:$0]  %s1, 1536, %s29, [#allocation7], 128, 128, 8
    $region9: #{tpu_custom_call.1} parent=1 // pred_fallthru
      _
    // Predicated region
    $region10: #{tpu_custom_call.1} parent=1 // pred_check
      _
    $region11: #{tpu_custom_call.1} parent=1 // pred_check_branch
      %36 = sbr.rel (0) target = $region13
    $region12: #{tpu_custom_call.1} parent=1 // pred_region
      %s38 = ssub.s32 1536, 1536
      %39 = vsyncadd [#allocation7], %s38
      %s40 = sshll.u32 [#allocation8], 4
      %s41 = int_to_ptr.vmem [resolvable:$true] %s40
      %46 = dma.hbm_to_vmem [thread:$0]  %s2, 1536, %s41, [#allocation7], 128, 128, 8
    $region13: #{tpu_custom_call.1} parent=1 // pred_fallthru
      _
    // Predicated region
    $region14: #{tpu_custom_call.1} parent=1 // pred_check
      _
    $region15: #{tpu_custom_call.1} parent=1 // pred_check_branch
      %48 = sbr.rel (0) target = $region17
    $region16: #{tpu_custom_call.1} parent=1 // pred_region
      %49 = dma.done [#allocation4], 1536
    $region17: #{tpu_custom_call.1} parent=1 // pred_fallthru
      _
    // Predicated region
    $region18: #{tpu_custom_call.1} parent=1 // pred_check
      _
    $region19: #{tpu_custom_call.1} parent=1 // pred_check_branch
      %51 = sbr.rel (0) target = $region21
    $region20: #{tpu_custom_call.1} parent=1 // pred_region
      %52 = dma.done [#allocation7], 1536
    $region21: #{tpu_custom_call.1} parent=1 // pred_fallthru
      _
    // Predicated region
    $region22: #{tpu_custom_call.1} parent=1 // pred_check
      _
    $region23: #{tpu_custom_call.1} parent=1 // pred_check_branch
      %54 = sbr.rel (0) target = $region25
    $region24: #{tpu_custom_call.1} parent=1 // pred_region
      %55 = dma.done [#allocation7], 1536
    $region25: #{tpu_custom_call.1} parent=1 // pred_fallthru
      _
    %p56 = scmp.eq.s32.totalorder 0, 0
    // Predicated region
    $region26: #{tpu_custom_call.1} parent=1 // pred_check
      %p57 = pneg %p56
    $region27: #{tpu_custom_call.1} parent=1 // pred_check_branch
      %59 = sbr.rel (%p57) target = $region29
    $region28: #{tpu_custom_call.1} parent=1 // pred_region
      %s60 = scalar_lea.smem [#allocation2], 0
      %61 = sst [smem:[%s60]] 0.0
      %s62 = scalar_lea.smem [#allocation2], 1
      %63 = sst [smem:[%s62]] 0.0
      %s64 = scalar_lea.smem [#allocation2], 2
      %65 = sst [smem:[%s64]] 0.0
      %s66 = scalar_lea.smem [#allocation2], 3
      %67 = sst [smem:[%s66]] 0.0
      %s68 = scalar_lea.smem [#allocation2], 4
      %69 = sst [smem:[%s68]] 0.0
      %s70 = scalar_lea.smem [#allocation2], 5
      %71 = sst [smem:[%s70]] 0.0
      %s72 = scalar_lea.smem [#allocation2], 6
      %73 = sst [smem:[%s72]] 0.0
      %s74 = scalar_lea.smem [#allocation2], 7
      %75 = sst [smem:[%s74]] 0.0
    $region29: #{tpu_custom_call.1} parent=1 // pred_fallthru
      _
    %v76 = vld [vmem:[#allocation3] sm:$0xff]
    %v77 = vld [vmem:[#allocation3 + $0x8] sm:$0xff]
    %v78 = vld [vmem:[#allocation3 + $0x10] sm:$0xff]
    %v79 = vld [vmem:[#allocation3 + $0x18] sm:$0xff]
    %v80 = vld [vmem:[#allocation3 + $0x20] sm:$0xff]
    %v81 = vld [vmem:[#allocation3 + $0x28] sm:$0xff]
    %v82 = vld [vmem:[#allocation3 + $0x30] sm:$0xff]
    %v83 = vld [vmem:[#allocation3 + $0x38] sm:$0xff]
    %v84 = vld [vmem:[#allocation3 + $0x40] sm:$0xff]
    %v85 = vld [vmem:[#allocation3 + $0x48] sm:$0xff]
    %v86 = vld [vmem:[#allocation3 + $0x50] sm:$0xff]
    %v87 = vld [vmem:[#allocation3 + $0x58] sm:$0xff]
    %v88 = vld [vmem:[#allocation6] sm:$0xff]
    %v89 = vld [vmem:[#allocation6 + $0x8] sm:$0xff]
    %v90 = vld [vmem:[#allocation6 + $0x10] sm:$0xff]
    %v91 = vld [vmem:[#allocation6 + $0x18] sm:$0xff]
    %v92 = vld [vmem:[#allocation6 + $0x20] sm:$0xff]
    %v93 = vld [vmem:[#allocation6 + $0x28] sm:$0xff]
    %v94 = vld [vmem:[#allocation6 + $0x30] sm:$0xff]
    %v95 = vld [vmem:[#allocation6 + $0x38] sm:$0xff]
    %v96 = vld [vmem:[#allocation6 + $0x40] sm:$0xff]
    %v97 = vld [vmem:[#allocation6 + $0x48] sm:$0xff]
    %v98 = vld [vmem:[#allocation6 + $0x50] sm:$0xff]
    %v99 = vld [vmem:[#allocation6 + $0x58] sm:$0xff]
    %v100 = vld [vmem:[#allocation8] sm:$0xff]
    %v101 = vld [vmem:[#allocation8 + $0x8] sm:$0xff]
    %v102 = vld [vmem:[#allocation8 + $0x10] sm:$0xff]
    %v103 = vld [vmem:[#allocation8 + $0x18] sm:$0xff]
    %v104 = vld [vmem:[#allocation8 + $0x20] sm:$0xff]
    %v105 = vld [vmem:[#allocation8 + $0x28] sm:$0xff]
    %v106 = vld [vmem:[#allocation8 + $0x30] sm:$0xff]
    %v107 = vld [vmem:[#allocation8 + $0x38] sm:$0xff]
    %v108 = vld [vmem:[#allocation8 + $0x40] sm:$0xff]
    %v109 = vld [vmem:[#allocation8 + $0x48] sm:$0xff]
    %v110 = vld [vmem:[#allocation8 + $0x50] sm:$0xff]
    %v111 = vld [vmem:[#allocation8 + $0x58] sm:$0xff]
    %v112 = vsub.f32 %v76, %v88
    %v113 = vsub.f32 %v77, %v89
    %v114 = vsub.f32 %v82, %v94
    %v115 = vsub.f32 %v83, %v95
    %v116 = vmul.f32 %v112, 0.299
    %v117 = vmul.f32 %v113, 0.299
    %v118 = vmul.f32 %v114, 0.299
    %v119 = vmul.f32 %v115, 0.299
    %v120 = vsub.f32 %v78, %v90
    %v121 = vsub.f32 %v79, %v91
    %v122 = vsub.f32 %v84, %v96
    %v123 = vsub.f32 %v85, %v97
    %v124 = vmul.f32 %v120, 0.587
    %v125 = vmul.f32 %v121, 0.587
    %v126 = vmul.f32 %v122, 0.587
    %v127 = vmul.f32 %v123, 0.587
    %v128 = vadd.f32 %v116, %v124
    %v129 = vadd.f32 %v117, %v125
    %v130 = vadd.f32 %v118, %v126
    %v131 = vadd.f32 %v119, %v127
    %v132 = vsub.f32 %v80, %v92
    %v133 = vsub.f32 %v81, %v93
    %v134 = vsub.f32 %v86, %v98
    %v135 = vsub.f32 %v87, %v99
    %v136 = vmul.f32 %v132, 0.114
    %v137 = vmul.f32 %v133, 0.114
    %v138 = vmul.f32 %v134, 0.114
    %v139 = vmul.f32 %v135, 0.114
    %v140 = vadd.f32 %v128, %v136
    %v141 = vadd.f32 %v129, %v137
    %v142 = vadd.f32 %v130, %v138
    %v143 = vadd.f32 %v131, %v139
    %148 = vrot.lane.b32.xlu0 %v140, 1
    %v149 = vpop.permute.xlu0 %148
    %150 = vrot.lane.b32.xlu0 %v141, 1
    %v151 = vpop.permute.xlu0 %150
    %152 = vrot.lane.b32.xlu0 %v142, 1
    %v153 = vpop.permute.xlu0 %152
    %154 = vrot.lane.b32.xlu0 %v143, 1
    %v155 = vpop.permute.xlu0 %154
    %v160 = vsub.f32 %v140, %v149
    %v161 = vsub.f32 %v141, %v151
    %v162 = vsub.f32 %v142, %v153
    %v163 = vsub.f32 %v143, %v155
    %v164 = vand.u32 2147483647, %v160
    %v165 = vand.u32 2147483647, %v161
    %v166 = vand.u32 2147483647, %v162
    %v167 = vand.u32 2147483647, %v163
    %172 = vrot.lane.b32.xlu0 %v164, 127
    %v173 = vpop.permute.xlu0 %172
    %174 = vrot.lane.b32.xlu0 %v165, 127
    %v175 = vpop.permute.xlu0 %174
    %176 = vrot.lane.b32.xlu0 %v166, 127
    %v177 = vpop.permute.xlu0 %176
    %178 = vrot.lane.b32.xlu0 %v167, 127
    %v179 = vpop.permute.xlu0 %178
    %vm184 = vcmask 121856
    %v185 = vsel %vm184, %v173, 0.0
    %v186 = vsel %vm184, %v175, 0.0
    %v187 = vadd.f32 %v185, %v186
    %v188 = vsel %vm184, %v177, 0.0
    %v189 = vadd.f32 %v187, %v188
    %v190 = vsel %vm184, %v179, 0.0
    %v191 = vadd.f32 %v189, %v190
    %192 = vadd.xlane.f32.xlu0 %v191
    %v193 = vpop.xlane.xlu0 %192
    %v194 = vrot.slane %v193, 4
    %v195 = vadd.f32 %v193, %v194
    %v196 = vrot.slane %v195, 2
    %v197 = vadd.f32 %v195, %v196
    %v198 = vrot.slane %v197, 1
    %v199 = vadd.f32 %v197, %v198
    %s200 = vtos %v199
    %s201 = smul.f32 %s200, 0.0020833334
    %vm202 = vcmask 1040384
    %v203 = vrot.slane %v140, 7
    %v204 = vrot.slane %v141, 7
    %v205 = vsel %vm202, %v203, %v204
    %v206 = vrot.slane %v142, 7
    %v207 = vrot.slane %v143, 7
    %v208 = vsel %vm202, %v206, %v207
    %v213 = vsub.f32 %v140, %v203
    %v214 = vsub.f32 %v141, %v205
    %v215 = vsub.f32 %v142, %v206
    %v216 = vsub.f32 %v143, %v208
    %v217 = vand.u32 2147483647, %v213
    %v218 = vand.u32 2147483647, %v214
    %v219 = vand.u32 2147483647, %v215
    %v220 = vand.u32 2147483647, %v216
    %vm225 = vcmask 1046528
    %v226 = vrot.slane %v217, 1
    %v227 = vrot.slane %v218, 1
    %v228 = vsel %vm225, %v226, %v227
    %v229 = vrot.slane %v219, 1
    %v230 = vrot.slane %v220, 1
    %v231 = vsel %vm225, %v229, %v230
    %vm236 = vcmask 130048
    %v237 = vsel %vm236, %v228, 0.0
    %vm238 = vcmask 129024
    %v239 = vsel %vm238, %v227, 0.0
    %v240 = vadd.f32 %v237, %v239
    %v241 = vsel %vm236, %v231, 0.0
    %v242 = vadd.f32 %v240, %v241
    %v243 = vsel %vm238, %v230, 0.0
    %v244 = vadd.f32 %v242, %v243
    %245 = vadd.xlane.f32.xlu0 %v244
    %v246 = vpop.xlane.xlu0 %245
    %v247 = vrot.slane %v246, 4
    %v248 = vadd.f32 %v246, %v247
    %v249 = vrot.slane %v248, 2
    %v250 = vadd.f32 %v248, %v249
    %v251 = vrot.slane %v250, 1
    %v252 = vadd.f32 %v250, %v251
    %s253 = vtos %v252
    %s254 = smul.f32 %s253, 0.0020833334
    %s255 = sadd.f32 %s201, %s254
    %v256 = vsel %vm236, %v76, 0.0
    %257 = vadd.xlane.f32.xlu0 %v256
    %v258 = vpop.xlane.xlu0 %257
    %v259 = vsel %vm236, %v77, 0.0
    %260 = vadd.xlane.f32.xlu0 %v259
    %v261 = vpop.xlane.xlu0 %260
    %v262 = vsel %vm236, %v82, 0.0
    %263 = vadd.xlane.f32.xlu0 %v262
    %v264 = vpop.xlane.xlu0 %263
    %v265 = vsel %vm236, %v83, 0.0
    %266 = vadd.xlane.f32.xlu0 %v265
    %v267 = vpop.xlane.xlu0 %266
    %v272 = vlaneseq
    %v273 = vand.u32 %v272, 127
    %v274 = vlaneseq
    %v275 = vshrl.u32 %v274, 7
    %v276 = vsub.s32 %v273, %v275
    %v277 = vrot.slane %v258, %v276
    %v278 = vadd.s32 %v273, 4294967288
    %v279 = vlaneseq
    %v280 = vshrl.u32 %v279, 7
    %v281 = vsub.s32 %v278, %v280
    %v282 = vrot.slane %v261, %v281
    %vm283 = vcmask 130112
    %v284 = vsel %vm283, %v282, %v277
    %v285 = vlaneseq
    %v286 = vshrl.u32 %v285, 7
    %v287 = vsub.s32 %v273, %v286
    %v288 = vrot.slane %v264, %v287
    %v289 = vlaneseq
    %v290 = vshrl.u32 %v289, 7
    %v291 = vsub.s32 %v278, %v290
    %v292 = vrot.slane %v267, %v291
    %v293 = vsel %vm283, %v292, %v288
    %vm294 = vcmask 1041409
    %v295 = vsel %vm294, %v293, %v284
    %vm297 = vcmask 123904
    %v298 = vsel %vm297, %v295, 0.0
    %299 = vadd.xlane.f32.xlu0 %v298
    %v300 = vpop.xlane.xlu0 %299
    %v301 = vmul.f32 %v300, 0.00390625
    %v302 = vsel %vm236, %v78, 0.0
    %303 = vadd.xlane.f32.xlu0 %v302
    %v304 = vpop.xlane.xlu0 %303
    %v305 = vsel %vm236, %v79, 0.0
    %306 = vadd.xlane.f32.xlu0 %v305
    %v307 = vpop.xlane.xlu0 %306
    %v308 = vsel %vm236, %v84, 0.0
    %309 = vadd.xlane.f32.xlu0 %v308
    %v310 = vpop.xlane.xlu0 %309
    %v311 = vsel %vm236, %v85, 0.0
    %312 = vadd.xlane.f32.xlu0 %v311
    %v313 = vpop.xlane.xlu0 %312
    %v318 = vlaneseq
    %v319 = vshrl.u32 %v318, 7
    %v320 = vsub.s32 %v273, %v319
    %v321 = vrot.slane %v304, %v320
    %v322 = vlaneseq
    %v323 = vshrl.u32 %v322, 7
    %v324 = vsub.s32 %v278, %v323
    %v325 = vrot.slane %v307, %v324
    %v326 = vsel %vm283, %v325, %v321
    %v327 = vlaneseq
    %v328 = vshrl.u32 %v327, 7
    %v329 = vsub.s32 %v273, %v328
    %v330 = vrot.slane %v310, %v329
    %v331 = vlaneseq
    %v332 = vshrl.u32 %v331, 7
    %v333 = vsub.s32 %v278, %v332
    %v334 = vrot.slane %v313, %v333
    %v335 = vsel %vm283, %v334, %v330
    %v336 = vsel %vm294, %v335, %v326
    %v338 = vsel %vm297, %v336, 0.0
    %339 = vadd.xlane.f32.xlu0 %v338
    %v340 = vpop.xlane.xlu0 %339
    %v341 = vmul.f32 %v340, 0.00390625
    %v342 = vsel %vm236, %v80, 0.0
    %343 = vadd.xlane.f32.xlu0 %v342
    %v344 = vpop.xlane.xlu0 %343
    %v345 = vsel %vm236, %v81, 0.0
    %346 = vadd.xlane.f32.xlu0 %v345
    %v347 = vpop.xlane.xlu0 %346
    %v348 = vsel %vm236, %v86, 0.0
    %349 = vadd.xlane.f32.xlu0 %v348
    %v350 = vpop.xlane.xlu0 %349
    %v351 = vsel %vm236, %v87, 0.0
    %352 = vadd.xlane.f32.xlu0 %v351
    %v353 = vpop.xlane.xlu0 %352
    %v358 = vlaneseq
    %v359 = vshrl.u32 %v358, 7
    %v360 = vsub.s32 %v273, %v359
    %v361 = vrot.slane %v344, %v360
    %v362 = vlaneseq
    %v363 = vshrl.u32 %v362, 7
    %v364 = vsub.s32 %v278, %v363
    %v365 = vrot.slane %v347, %v364
    %v366 = vsel %vm283, %v365, %v361
    %v367 = vlaneseq
    %v368 = vshrl.u32 %v367, 7
    %v369 = vsub.s32 %v273, %v368
    %v370 = vrot.slane %v350, %v369
    %v371 = vlaneseq
    %v372 = vshrl.u32 %v371, 7
    %v373 = vsub.s32 %v278, %v372
    %v374 = vrot.slane %v353, %v373
    %v375 = vsel %vm283, %v374, %v370
    %v376 = vsel %vm294, %v375, %v366
    %v378 = vsel %vm297, %v376, 0.0
    %379 = vadd.xlane.f32.xlu0 %v378
    %v380 = vpop.xlane.xlu0 %379
    %v381 = vmul.f32 %v380, 0.00390625
    %v382 = vsub.f32 %v301, 0.6
    %v383 = vand.u32 2147483647, %v382
    %v384 = vsub.f32 %v341, 0.6
    %v385 = vand.u32 2147483647, %v384
    %v386 = vadd.f32 %v383, %v385
    %v387 = vsub.f32 %v381, 0.6
    %v388 = vand.u32 2147483647, %v387
    %v389 = vadd.f32 %v386, %v388
    %vm390 = vcmask 1024
    %v391 = vsel %vm390, %v389, 0.0
    %392 = vadd.xlane.f32.xlu0 %v391
    %v393 = vpop.xlane.xlu0 %392
    %v394 = vrot.slane %v393, 4
    %v395 = vadd.f32 %v393, %v394
    %v396 = vrot.slane %v395, 2
    %v397 = vadd.f32 %v395, %v396
    %v398 = vrot.slane %v397, 1
    %v399 = vadd.f32 %v397, %v398
    %s400 = vtos %v399
    %s401 = smul.f32 %s400, 0.16666667
    %v402 = vsub.f32 %v301, %v341
    %v403 = vand.u32 2147483647, %v402
    %v404 = vsub.f32 %v301, %v381
    %v405 = vand.u32 2147483647, %v404
    %v406 = vadd.f32 %v403, %v405
    %v407 = vsub.f32 %v341, %v381
    %v408 = vand.u32 2147483647, %v407
    %v409 = vadd.f32 %v406, %v408
    %v410 = vsel %vm390, %v409, 0.0
    %411 = vadd.xlane.f32.xlu0 %v410
    %v412 = vpop.xlane.xlu0 %411
    %v413 = vrot.slane %v412, 4
    %v414 = vadd.f32 %v412, %v413
    %v415 = vrot.slane %v414, 2
    %v416 = vadd.f32 %v414, %v415
    %v417 = vrot.slane %v416, 1
    %v418 = vadd.f32 %v416, %v417
    %s419 = vtos %v418
    %s420 = smul.f32 %s419, 0.5
    %v433 = vrot.slane %v100, 7
    %v434 = vrot.slane %v101, 7
    %v435 = vsel %vm202, %v433, %v434
    %v436 = vrot.slane %v102, 7
    %v437 = vrot.slane %v103, 7
    %v438 = vsel %vm202, %v436, %v437
    %v439 = vrot.slane %v104, 7
    %v440 = vrot.slane %v105, 7
    %v441 = vsel %vm202, %v439, %v440
    %v442 = vrot.slane %v106, 7
    %v443 = vrot.slane %v107, 7
    %v444 = vsel %vm202, %v442, %v443
    %v445 = vrot.slane %v108, 7
    %v446 = vrot.slane %v109, 7
    %v447 = vsel %vm202, %v445, %v446
    %v448 = vrot.slane %v110, 7
    %v449 = vrot.slane %v111, 7
    %v450 = vsel %vm202, %v448, %v449
    %v463 = vsub.f32 %v100, %v433
    %v464 = vsub.f32 %v101, %v435
    %v465 = vsub.f32 %v102, %v436
    %v466 = vsub.f32 %v103, %v438
    %v467 = vsub.f32 %v104, %v439
    %v468 = vsub.f32 %v105, %v441
    %v469 = vsub.f32 %v106, %v442
    %v470 = vsub.f32 %v107, %v444
    %v471 = vsub.f32 %v108, %v445
    %v472 = vsub.f32 %v109, %v447
    %v473 = vsub.f32 %v110, %v448
    %v474 = vsub.f32 %v111, %v450
    %v475 = vand.u32 2147483647, %v463
    %v476 = vand.u32 2147483647, %v464
    %v477 = vand.u32 2147483647, %v465
    %v478 = vand.u32 2147483647, %v466
    %v479 = vand.u32 2147483647, %v467
    %v480 = vand.u32 2147483647, %v468
    %v481 = vand.u32 2147483647, %v469
    %v482 = vand.u32 2147483647, %v470
    %v483 = vand.u32 2147483647, %v471
    %v484 = vand.u32 2147483647, %v472
    %v485 = vand.u32 2147483647, %v473
    %v486 = vand.u32 2147483647, %v474
    %v499 = vrot.slane %v475, 1
    %v500 = vrot.slane %v476, 1
    %v501 = vsel %vm225, %v499, %v500
    %v502 = vrot.slane %v477, 1
    %v503 = vrot.slane %v478, 1
    %v504 = vsel %vm225, %v502, %v503
    %v505 = vrot.slane %v479, 1
    %v506 = vrot.slane %v480, 1
    %v507 = vsel %vm225, %v505, %v506
    %v508 = vrot.slane %v481, 1
    %v509 = vrot.slane %v482, 1
    %v510 = vsel %vm225, %v508, %v509
    %v511 = vrot.slane %v483, 1
    %v512 = vrot.slane %v484, 1
    %v513 = vsel %vm225, %v511, %v512
    %v514 = vrot.slane %v485, 1
    %v515 = vrot.slane %v486, 1
    %v516 = vsel %vm225, %v514, %v515
    %v529 = vsel %vm236, %v501, 0.0
    %v530 = vsel %vm238, %v500, 0.0
    %v531 = vadd.f32 %v529, %v530
    %v532 = vsel %vm236, %v504, 0.0
    %v533 = vadd.f32 %v531, %v532
    %v534 = vsel %vm238, %v503, 0.0
    %v535 = vadd.f32 %v533, %v534
    %v536 = vsel %vm236, %v507, 0.0
    %v537 = vadd.f32 %v535, %v536
    %v538 = vsel %vm238, %v506, 0.0
    %v539 = vadd.f32 %v537, %v538
    %v540 = vsel %vm236, %v510, 0.0
    %v541 = vadd.f32 %v539, %v540
    %v542 = vsel %vm238, %v509, 0.0
    %v543 = vadd.f32 %v541, %v542
    %v544 = vsel %vm236, %v513, 0.0
    %v545 = vadd.f32 %v543, %v544
    %v546 = vsel %vm238, %v512, 0.0
    %v547 = vadd.f32 %v545, %v546
    %v548 = vsel %vm236, %v516, 0.0
    %v549 = vadd.f32 %v547, %v548
    %v550 = vsel %vm238, %v515, 0.0
    %v551 = vadd.f32 %v549, %v550
    %552 = vadd.xlane.f32.xlu0 %v551
    %v553 = vpop.xlane.xlu0 %552
    %v554 = vrot.slane %v553, 4
    %v555 = vadd.f32 %v553, %v554
    %v556 = vrot.slane %v555, 2
    %v557 = vadd.f32 %v555, %v556
    %v558 = vrot.slane %v557, 1
    %v559 = vadd.f32 %v557, %v558
    %s560 = vtos %v559
    %s561 = smul.f32 %s560, 0.00069444446
    %562 = vrot.lane.b32.xlu0 %v100, 1
    %v563 = vpop.permute.xlu0 %562
    %564 = vrot.lane.b32.xlu0 %v101, 1
    %v565 = vpop.permute.xlu0 %564
    %566 = vrot.lane.b32.xlu0 %v102, 1
    %v567 = vpop.permute.xlu0 %566
    %568 = vrot.lane.b32.xlu0 %v103, 1
    %v569 = vpop.permute.xlu0 %568
    %570 = vrot.lane.b32.xlu0 %v104, 1
    %v571 = vpop.permute.xlu0 %570
    %572 = vrot.lane.b32.xlu0 %v105, 1
    %v573 = vpop.permute.xlu0 %572
    %574 = vrot.lane.b32.xlu0 %v106, 1
    %v575 = vpop.permute.xlu0 %574
    %576 = vrot.lane.b32.xlu0 %v107, 1
    %v577 = vpop.permute.xlu0 %576
    %578 = vrot.lane.b32.xlu0 %v108, 1
    %v579 = vpop.permute.xlu0 %578
    %580 = vrot.lane.b32.xlu0 %v109, 1
    %v581 = vpop.permute.xlu0 %580
    %582 = vrot.lane.b32.xlu0 %v110, 1
    %v583 = vpop.permute.xlu0 %582
    %584 = vrot.lane.b32.xlu0 %v111, 1
    %v585 = vpop.permute.xlu0 %584
    %v598 = vsub.f32 %v100, %v563
    %v599 = vsub.f32 %v101, %v565
    %v600 = vsub.f32 %v102, %v567
    %v601 = vsub.f32 %v103, %v569
    %v602 = vsub.f32 %v104, %v571
    %v603 = vsub.f32 %v105, %v573
    %v604 = vsub.f32 %v106, %v575
    %v605 = vsub.f32 %v107, %v577
    %v606 = vsub.f32 %v108, %v579
    %v607 = vsub.f32 %v109, %v581
    %v608 = vsub.f32 %v110, %v583
    %v609 = vsub.f32 %v111, %v585
    %v610 = vand.u32 2147483647, %v598
    %v611 = vand.u32 2147483647, %v599
    %v612 = vand.u32 2147483647, %v600
    %v613 = vand.u32 2147483647, %v601
    %v614 = vand.u32 2147483647, %v602
    %v615 = vand.u32 2147483647, %v603
    %v616 = vand.u32 2147483647, %v604
    %v617 = vand.u32 2147483647, %v605
    %v618 = vand.u32 2147483647, %v606
    %v619 = vand.u32 2147483647, %v607
    %v620 = vand.u32 2147483647, %v608
    %v621 = vand.u32 2147483647, %v609
    %634 = vrot.lane.b32.xlu0 %v610, 127
    %v635 = vpop.permute.xlu0 %634
    %636 = vrot.lane.b32.xlu0 %v611, 127
    %v637 = vpop.permute.xlu0 %636
    %638 = vrot.lane.b32.xlu0 %v612, 127
    %v639 = vpop.permute.xlu0 %638
    %640 = vrot.lane.b32.xlu0 %v613, 127
    %v641 = vpop.permute.xlu0 %640
    %642 = vrot.lane.b32.xlu0 %v614, 127
    %v643 = vpop.permute.xlu0 %642
    %644 = vrot.lane.b32.xlu0 %v615, 127
    %v645 = vpop.permute.xlu0 %644
    %646 = vrot.lane.b32.xlu0 %v616, 127
    %v647 = vpop.permute.xlu0 %646
    %648 = vrot.lane.b32.xlu0 %v617, 127
    %v649 = vpop.permute.xlu0 %648
    %650 = vrot.lane.b32.xlu0 %v618, 127
    %v651 = vpop.permute.xlu0 %650
    %652 = vrot.lane.b32.xlu0 %v619, 127
    %v653 = vpop.permute.xlu0 %652
    %654 = vrot.lane.b32.xlu0 %v620, 127
    %v655 = vpop.permute.xlu0 %654
    %656 = vrot.lane.b32.xlu0 %v621, 127
    %v657 = vpop.permute.xlu0 %656
    %v670 = vsel %vm184, %v635, 0.0
    %v671 = vsel %vm184, %v637, 0.0
    %v672 = vadd.f32 %v670, %v671
    %v673 = vsel %vm184, %v639, 0.0
    %v674 = vadd.f32 %v672, %v673
    %v675 = vsel %vm184, %v641, 0.0
    %v676 = vadd.f32 %v674, %v675
    %v677 = vsel %vm184, %v643, 0.0
    %v678 = vadd.f32 %v676, %v677
    %v679 = vsel %vm184, %v645, 0.0
    %v680 = vadd.f32 %v678, %v679
    %v681 = vsel %vm184, %v647, 0.0
    %v682 = vadd.f32 %v680, %v681
    %v683 = vsel %vm184, %v649, 0.0
    %v684 = vadd.f32 %v682, %v683
    %v685 = vsel %vm184, %v651, 0.0
    %v686 = vadd.f32 %v684, %v685
    %v687 = vsel %vm184, %v653, 0.0
    %v688 = vadd.f32 %v686, %v687
    %v689 = vsel %vm184, %v655, 0.0
    %v690 = vadd.f32 %v688, %v689
    %v691 = vsel %vm184, %v657, 0.0
    %v692 = vadd.f32 %v690, %v691
    %693 = vadd.xlane.f32.xlu0 %v692
    %v694 = vpop.xlane.xlu0 %693
    %v695 = vrot.slane %v694, 4
    %v696 = vadd.f32 %v694, %v695
    %v697 = vrot.slane %v696, 2
    %v698 = vadd.f32 %v696, %v697
    %v699 = vrot.slane %v698, 1
    %v700 = vadd.f32 %v698, %v699
    %s701 = vtos %v700
    %s702 = smul.f32 %s701, 0.00069444446
    %s703 = sadd.f32 %s561, %s702
    %s704 = sld [smem:[#allocation2]]
    %s705 = sadd.f32 %s704, %s255
    %s706 = scalar_lea.smem [#allocation2], 0
    %707 = sst [smem:[%s706]] %s705
    %s708 = sld [smem:[#allocation2 + $0x1]]
    %s709 = sadd.f32 %s708, %s401
    %s710 = scalar_lea.smem [#allocation2], 1
    %711 = sst [smem:[%s710]] %s709
    %s712 = sld [smem:[#allocation2 + $0x2]]
    %s713 = sadd.f32 %s712, %s420
    %s714 = scalar_lea.smem [#allocation2], 2
    %715 = sst [smem:[%s714]] %s713
    %s716 = sld [smem:[#allocation2 + $0x3]]
    %s717 = sadd.f32 %s716, %s703
    %s718 = scalar_lea.smem [#allocation2], 3
    %719 = sst [smem:[%s718]] %s717
    %s720 = sld [smem:[#allocation2]]
    %s721 = sld [smem:[#allocation2 + $0x1]]
    %s722 = sld [smem:[#allocation2 + $0x2]]
    %s723 = sld [smem:[#allocation2 + $0x3]]
    %s724 = smul.f32 %s721, 10.0
    %s725 = sadd.f32 %s720, %s724
    %s726 = smul.f32 %s722, 5.0
    %s727 = sadd.f32 %s725, %s726
    %s728 = smul.f32 %s723, 1600.0
    %s729 = sadd.f32 %s727, %s728
    %s730 = scalar_lea.smem [#allocation9], 0
    %731 = sst [smem:[%s730]] %s729
    %s732 = scalar_lea.smem [#allocation9], 1
    %733 = sst [smem:[%s732]] %s720
    %s734 = scalar_lea.smem [#allocation9], 2
    %735 = sst [smem:[%s734]] %s721
    %s736 = scalar_lea.smem [#allocation9], 3
    %737 = sst [smem:[%s736]] %s722
    %s738 = scalar_lea.smem [#allocation9], 4
    %739 = sst [smem:[%s738]] %s723
    %s740 = scalar_lea.smem [#allocation9], 5
    %741 = sst [smem:[%s740]] 0.0
    %s742 = scalar_lea.smem [#allocation9], 6
    %743 = sst [smem:[%s742]] 0.0
    %s744 = scalar_lea.smem [#allocation9], 7
    %745 = sst [smem:[%s744]] 0.0
    // Predicated region
    $region30: #{tpu_custom_call.1} parent=1 // pred_check
      _
    $region31: #{tpu_custom_call.1} parent=1 // pred_check_branch
      %747 = sbr.rel (0) target = $region33
    $region32: #{tpu_custom_call.1} parent=1 // pred_region
      %s749 = ssub.s32 16, 16
      %750 = vsyncadd [#allocation5], %s749
      %753 = dma.smem_to_hbm [#allocation9], 16, %s3, [#allocation5]
    $region33: #{tpu_custom_call.1} parent=1 // pred_fallthru
      _
    // Predicated region
    $region34: #{tpu_custom_call.1} parent=1 // pred_check
      _
    $region35: #{tpu_custom_call.1} parent=1 // pred_check_branch
      %755 = sbr.rel (0) target = $region37
    $region36: #{tpu_custom_call.1} parent=1 // pred_region
      %756 = dma.done [#allocation5], 16
    $region37: #{tpu_custom_call.1} parent=1 // pred_fallthru
      _
    %757 = sfence
    %758 = vsyncpa [#allocation4], 1
    %759 = vsyncpa [#allocation7], 1
    %760 = vsyncpa [#allocation5], 1

</llo_original>
